<compile_context>
chip_gen: v7x
topology: tpu7x:2x2x1
jax: 0.10.0
libtpu: 0.0.40
codegen_flags: <defaults>
</compile_context>

<pallas_src>
import functools

import jax
import jax.numpy as jnp
from jax.experimental import pallas as pl
from jax.experimental.pallas import tpu as pltpu

LANE = 128


def _bce_sum_kernel(x_ref, t_ref, out_ref, *, n_chunks, total_blocks,
                    block_rows, rem_rows, has_pad_blocks):
    """Accumulates per-shard partial sums of elementwise BCE into out_ref (8, C)."""
    k = pl.program_id(1)

    @pl.when(k == 0)
    def _init():
        out_ref[...] = jnp.zeros_like(out_ref)

    x = x_ref[...].astype(jnp.float32)
    t = t_ref[...].astype(jnp.float32)
    # Numerically-stable elementwise BCE-with-logits (PyTorch formulation).
    bce = jnp.maximum(x, 0.0) - x * t + jnp.log1p(jnp.exp(-jnp.abs(x)))

    groups = block_rows // 8
    cols = bce.shape[-1]
    # Sublane-group partial sum -> (8, cols): pure VPU vreg adds; the final
    # cross-lane/sublane reduce happens once, in the JAX wrapper.
    partial = jnp.sum(bce.reshape(groups, 8, cols), axis=0)

    ragged = rem_rows != 0                       # static Python bool
    if not ragged and not has_pad_blocks:
        # Hot path: every block is full and real -> no masks, no guards.
        out_ref[...] += partial
    else:
        g = pl.program_id(0) * n_chunks + k      # global (logical) block id
        last = total_blocks - 1
        if ragged:
            @pl.when(g < last)
            def _full():
                out_ref[...] += partial

            @pl.when(g == last)                  # only the ragged block pays
            def _tail():
                row = jax.lax.broadcasted_iota(jnp.int32, bce.shape, 0)
                masked = jnp.where(row < rem_rows, bce, 0.0)
                out_ref[...] += jnp.sum(masked.reshape(groups, 8, cols), axis=0)
            # g > last: trailing padding block of the rectangular grid -> skip.
        else:
            @pl.when(g <= last)
            def _full():
                out_ref[...] += partial


def _focal_from_bce_sum(bce_sum, n_elems, alpha, gamma):
    mean_bce = bce_sum / n_elems                 # BCEWithLogitsLoss (mean)
    pt = jnp.exp(-mean_bce)
    return alpha * (1.0 - pt) ** gamma * mean_bce


def focal_loss(logits, targets, alpha=1.0, gamma=2, *,
               block_elems=512 * 1024, num_parallel=2,
               min_kernel_elems=65536):
    assert logits.shape == targets.shape, (logits.shape, targets.shape)
    n = int(logits.size)
    assert n > 0
    alpha = float(alpha)
    if float(gamma).is_integer():
        gamma = int(gamma)   # integer_pow (VPU multiplies), not transcendental pow

    if n < min_kernel_elems:
        # Tiny inputs: pallas_call fixed cost dominates; fused XLA wins here.
        x = logits.astype(jnp.float32)
        t = targets.astype(jnp.float32)
        bce_sum = jnp.sum(jnp.maximum(x, 0.0) - x * t
                          + jnp.log1p(jnp.exp(-jnp.abs(x))))
        return _focal_from_bce_sum(bce_sum, n, alpha, gamma)

    # Copy-free lane-friendly 2-D view of both inputs (no pad, no extra HBM pass).
    if n % LANE == 0:
        rows, cols = n // LANE, LANE
    elif logits.ndim >= 2:
        rows, cols = n // logits.shape[-1], logits.shape[-1]
    else:
        rows, cols = 1, n
    x2 = logits.reshape(rows, cols)
    t2 = targets.reshape(rows, cols)

    # Row-block size: multiple of 8, ~block_elems elements per input block.
    tm = max(8, (int(block_elems) // cols) // 8 * 8)
    tm = min(tm, pl.cdiv(rows, 8) * 8)
    total_blocks = pl.cdiv(rows, tm)
    rem_rows = rows % tm                         # rows in the ragged last block
    n_par = max(1, min(int(num_parallel), total_blocks))
    n_chunks = pl.cdiv(total_blocks, n_par)
    has_pad_blocks = n_par * n_chunks != total_blocks

    if has_pad_blocks:
        def in_index(p, k):                      # clamp trailing padding blocks
            return (jnp.minimum(p * n_chunks + k, total_blocks - 1), 0)
    else:
        def in_index(p, k):
            return (p * n_chunks + k, 0)

    kernel = functools.partial(
        _bce_sum_kernel, n_chunks=n_chunks, total_blocks=total_blocks,
        block_rows=tm, rem_rows=rem_rows, has_pad_blocks=has_pad_blocks)

    partials = pl.pallas_call(
        kernel,
        out_shape=jax.ShapeDtypeStruct((n_par * 8, cols), jnp.float32),
        grid_spec=pltpu.PrefetchScalarGridSpec(
            num_scalar_prefetch=0,
            grid=(n_par, n_chunks),
            in_specs=[pl.BlockSpec((tm, cols), in_index),
                      pl.BlockSpec((tm, cols), in_index)],
            out_specs=pl.BlockSpec((8, cols), lambda p, k: (p, 0)),
        ),
        compiler_params=pltpu.CompilerParams(
            dimension_semantics=("parallel", "arbitrary"),
            vmem_limit_bytes=32 * 1024 * 1024),
    )(x2, t2)

    # O(1) epilogue in JAX: final cross-lane reduce + focal modulation.
    return _focal_from_bce_sum(jnp.sum(partials), n, alpha, gamma)


def reference_focal_loss(logits, targets, alpha=1.0, gamma=2):
    x = logits.astype(jnp.float32)
    t = targets.astype(jnp.float32)
    bce = jnp.mean(jnp.maximum(x, 0.0) - x * t + jnp.log1p(jnp.exp(-jnp.abs(x))))
    pt = jnp.exp(-bce)
    return alpha * (1.0 - pt) ** gamma * bce


if __name__ == "__main__":
    key = jax.random.PRNGKey(0)
    k1, k2, k3, k4 = jax.random.split(key, 4)

    # Case A: small multi-label classification shapes (module's typical use).
    B, C = 8, 300
    logits = jax.random.normal(k1, (B, C), jnp.float32) * 2.0
    targets = jax.random.bernoulli(k2, 0.3, (B, C)).astype(jnp.float32)
    out = jax.block_until_ready(focal_loss(logits, targets, min_kernel_elems=0))
    ref = reference_focal_loss(logits, targets)
    assert out.shape == ()
    assert jnp.allclose(out, ref, atol=1e-5, rtol=1e-5), (out, ref)

    # Case B: multi-block path — ragged last block, padded grid blocks and the
    # ("parallel", "arbitrary") 2-TensorCore split are all exercised.
    logits_b = jax.random.normal(k3, (513, 256), jnp.float32) * 3.0
    targets_b = jax.random.bernoulli(k4, 0.5, (513, 256)).astype(jnp.float32)
    out_b = jax.block_until_ready(
        focal_loss(logits_b, targets_b, block_elems=32 * 1024, min_kernel_elems=0))
    ref_b = reference_focal_loss(logits_b, targets_b)
    assert jnp.allclose(out_b, ref_b, atol=1e-5, rtol=1e-5), (out_b, ref_b)

    # Case C: bf16 logits stream through the kernel without a wrapper-side cast.
    logits_c = jax.random.normal(k1, (64, 512), jnp.float32).astype(jnp.bfloat16)
    targets_c = jax.random.bernoulli(k2, 0.2, (64, 512)).astype(jnp.float32)
    out_c = jax.block_until_ready(focal_loss(logits_c, targets_c, min_kernel_elems=0))
    ref_c = reference_focal_loss(logits_c, targets_c)
    assert jnp.allclose(out_c, ref_c, atol=1e-5, rtol=1e-5), (out_c, ref_c)

    # Case D: tiny input takes the pure-JAX fallback (no kernel launch).
    logits_d = jax.random.normal(k3, (4, 10), jnp.float32)
    targets_d = jax.random.bernoulli(k4, 0.5, (4, 10)).astype(jnp.float32)
    out_d = jax.block_until_ready(focal_loss(logits_d, targets_d))
    ref_d = reference_focal_loss(logits_d, targets_d)
    assert jnp.allclose(out_d, ref_d, atol=1e-6, rtol=1e-6), (out_d, ref_d)

    print("KERNEL_OK")
</pallas_src>

<mosaic_0001>
module attributes {stable_mosaic.version = 11 : i64} {
  func.func @_bce_sum_kernel(%arg0: i32, %arg1: i32, %arg2: memref<8x300xf32, #tpu.memory_space<vmem>>, %arg3: memref<8x300xf32, #tpu.memory_space<vmem>>, %arg4: memref<8x300xf32, #tpu.memory_space<vmem>>) attributes {dimension_semantics = [#tpu.dimension_semantics<parallel>, #tpu.dimension_semantics<arbitrary>], iteration_bounds = array<i64: 1, 1>, scalar_prefetch = 0 : i64, scratch_operands = 0 : i64, tpu.core_type = #tpu.core_type<tc>, window_params = [{transform_indices = @transform_0, window_bounds = array<i64: 8, 300>}, {transform_indices = @transform_1, window_bounds = array<i64: 8, 300>}, {transform_indices = @transform_2, window_bounds = array<i64: 8, 300>}]} {
    %c0_i32 = arith.constant 0 : i32
    %0 = arith.cmpi eq, %arg1, %c0_i32 : i32
    %1 = arith.extui %0 : i1 to i32
    %c0_i32_0 = arith.constant 0 : i32
    %2 = arith.cmpi ne, %1, %c0_i32_0 : i32
    scf.if %2 {
      %cst_10 = arith.constant 0.000000e+00 : f32
      %20 = vector.broadcast %cst_10 : f32 to vector<8x300xf32>
      %c0_11 = arith.constant 0 : index
      %c0_12 = arith.constant 0 : index
      %21 = vector.load %arg4[%c0_11, %c0_12] : memref<8x300xf32, #tpu.memory_space<vmem>>, vector<8x300xf32>
      tpu.vector_store %arg4[%c0_11, %c0_12], %20 {strides = array<i32>} : memref<8x300xf32, #tpu.memory_space<vmem>>, vector<8x300xf32>,
    } else {
    }
    %c0 = arith.constant 0 : index
    %c0_1 = arith.constant 0 : index
    %3 = vector.load %arg2[%c0, %c0_1] : memref<8x300xf32, #tpu.memory_space<vmem>>, vector<8x300xf32>
    %c0_2 = arith.constant 0 : index
    %c0_3 = arith.constant 0 : index
    %4 = vector.load %arg3[%c0_2, %c0_3] : memref<8x300xf32, #tpu.memory_space<vmem>>, vector<8x300xf32>
    %cst = arith.constant 0.000000e+00 : f32
    %5 = vector.broadcast %cst : f32 to vector<8x300xf32>
    %6 = arith.maximumf %3, %5 : vector<8x300xf32>
    %7 = arith.mulf %3, %4 : vector<8x300xf32>
    %8 = arith.subf %6, %7 : vector<8x300xf32>
    %9 = math.absf %3 : vector<8x300xf32>
    %cst_4 = arith.constant 0.000000e+00 : f32
    %10 = vector.broadcast %cst_4 : f32 to vector<8x300xf32>
    %11 = arith.subf %10, %9 : vector<8x300xf32>
    %12 = math.exp %11 : vector<8x300xf32>
    %13 = math.log1p %12 : vector<8x300xf32>
    %14 = arith.addf %8, %13 : vector<8x300xf32>
    %15 = vector.shape_cast %14 : vector<8x300xf32> to vector<1x8x300xf32>
    %cst_5 = arith.constant dense<0.000000e+00> : vector<8x300xf32>
    %16 = vector.multi_reduction <add>, %15, %cst_5 [0] : vector<1x8x300xf32> to vector<8x300xf32>
    %c0_6 = arith.constant 0 : index
    %c0_7 = arith.constant 0 : index
    %17 = vector.load %arg4[%c0_6, %c0_7] : memref<8x300xf32, #tpu.memory_space<vmem>>, vector<8x300xf32>
    %18 = arith.addf %17, %16 : vector<8x300xf32>
    %c0_8 = arith.constant 0 : index
    %c0_9 = arith.constant 0 : index
    %19 = vector.load %arg4[%c0_8, %c0_9] : memref<8x300xf32, #tpu.memory_space<vmem>>, vector<8x300xf32>
    tpu.vector_store %arg4[%c0_8, %c0_9], %18 {strides = array<i32>} : memref<8x300xf32, #tpu.memory_space<vmem>>, vector<8x300xf32>,
    return
  }
  func.func @transform_0(%arg0: i32, %arg1: i32) -> (i32, i32) {
    %c1_i32 = arith.constant 1 : i32
    %0 = arith.muli %arg0, %c1_i32 : i32
    %1 = arith.addi %0, %arg1 : i32
    %c0_i32 = arith.constant 0 : i32
    %c0_i32_0 = arith.constant 0 : i32
    return %1, %c0_i32 : i32, i32
  }
  func.func @transform_1(%arg0: i32, %arg1: i32) -> (i32, i32) {
    %c1_i32 = arith.constant 1 : i32
    %0 = arith.muli %arg0, %c1_i32 : i32
    %1 = arith.addi %0, %arg1 : i32
    %c0_i32 = arith.constant 0 : i32
    %c0_i32_0 = arith.constant 0 : i32
    return %1, %c0_i32 : i32, i32
  }
  func.func @transform_2(%arg0: i32, %arg1: i32) -> (i32, i32) {
    %c0_i32 = arith.constant 0 : i32
    %c0_i32_0 = arith.constant 0 : i32
    return %arg0, %c0_i32 : i32, i32
  }
}

</mosaic_0001>

<llo_original>
// kernel: tpu_custom_call.1
$region0: #{tpu_custom_call.1}
  #allocation0 [shape = 'u32[]', space=smem, size = 0x4, offset = 0x4, fixed_abs, tag = 'smem constant byte address 0x4 - core index']
  #allocation1 [shape = 'u32[144,128]{1,0:T(1,128)}', space=vmem, size = 0x12000, scoped, tag = 'internal scratch']
  %s0 = inlined_call_operand.hbm [shape: f32[8,300], index: 0, kind: input, shape index: {}]
  %s1 = inlined_call_operand.hbm [shape: f32[8,300], index: 1, kind: input, shape index: {}]
  %s2 = inlined_call_operand.hbm [shape: f32[8,300], index: 2, kind: output, shape index: {}]
  %s3 = sld [smem:[#allocation0]]
  $region30: #{tpu_custom_call.1} parent=0
    _
  %s5 = ssub.s32 1, %s3
  %s6 = scalar_select 0, %s5, %s3
  $region1: #{tpu_custom_call.1} parent=0
    #allocation2 [shape = 'u8[12288]{0}', space=vmem, size = 0x3000, scoped, tag = 'input window, operand 0, single buffered']
    #allocation3 [shape = 's32[1]{0}', space=sflag, size = 0x4, scoped, tag = 'scoped memory for tpu_custom_call.1']
    #allocation4 [shape = 's32[1]{0}', space=sflag, size = 0x4, scoped, tag = 'scoped memory for tpu_custom_call.1']
    #allocation5 [shape = 'u8[12288]{0}', space=vmem, size = 0x3000, scoped, tag = 'input window, operand 1, single buffered']
    #allocation6 [shape = 's32[1]{0}', space=sflag, size = 0x4, scoped, tag = 'scoped memory for tpu_custom_call.1']
    #allocation7 [shape = 'u8[12288]{0}', space=vmem, size = 0x3000, scoped, tag = 'output window, operand 0, single buffered']
    %7 = vsyncpa [#allocation3], 0
    %8 = vsyncpa [#allocation6], 0
    %9 = vsyncpa [#allocation4], 0
    // Predicated region
    $region2: #{tpu_custom_call.1} parent=1 // pred_check
      _
    $region3: #{tpu_custom_call.1} parent=1 // pred_check_branch
      %11 = sbr.rel (0) target = $region5
    $region4: #{tpu_custom_call.1} parent=1 // pred_region
      %s12 = sadd.s32 0, 0
      %s14 = ssub.s32 384, 384
      %15 = vsyncadd [#allocation3], %s14
      %s16 = smul.addr %s12, 3
      %s17 = smul.addr %s16, 128
      %s18 = scalar_lea.hbm %s0, %s17
      %s20 = sshll.u32 [#allocation2], 4
      %s21 = int_to_ptr.vmem [resolvable:$true] %s20
      %23 = dma.hbm_to_vmem [thread:$0]  %s18, 384, %s21, [#allocation3]
    $region5: #{tpu_custom_call.1} parent=1 // pred_fallthru
      _
    // Predicated region
    $region6: #{tpu_custom_call.1} parent=1 // pred_check
      _
    $region7: #{tpu_custom_call.1} parent=1 // pred_check_branch
      %25 = sbr.rel (0) target = $region9
    $region8: #{tpu_custom_call.1} parent=1 // pred_region
      %s26 = sadd.s32 0, 0
      %s28 = ssub.s32 384, 384
      %29 = vsyncadd [#allocation6], %s28
      %s30 = smul.addr %s26, 3
      %s31 = smul.addr %s30, 128
      %s32 = scalar_lea.hbm %s1, %s31
      %s34 = sshll.u32 [#allocation5], 4
      %s35 = int_to_ptr.vmem [resolvable:$true] %s34
      %37 = dma.hbm_to_vmem [thread:$0]  %s32, 384, %s35, [#allocation6]
    $region9: #{tpu_custom_call.1} parent=1 // pred_fallthru
      _
    // Predicated region
    $region10: #{tpu_custom_call.1} parent=1 // pred_check
      _
    $region11: #{tpu_custom_call.1} parent=1 // pred_check_branch
      %39 = sbr.rel (0) target = $region13
    $region12: #{tpu_custom_call.1} parent=1 // pred_region
      %40 = dma.done [#allocation3], 384
    $region13: #{tpu_custom_call.1} parent=1 // pred_fallthru
      _
    // Predicated region
    $region14: #{tpu_custom_call.1} parent=1 // pred_check
      _
    $region15: #{tpu_custom_call.1} parent=1 // pred_check_branch
      %42 = sbr.rel (0) target = $region17
    $region16: #{tpu_custom_call.1} parent=1 // pred_region
      %43 = dma.done [#allocation6], 384
    $region17: #{tpu_custom_call.1} parent=1 // pred_fallthru
      _
    %s44 = sadd.s32 0, 0
    %s45 = sadd.s32 0, 0
    %p46 = scmp.eq.s32.totalorder 0, 0
    // Predicated region
    $region18: #{tpu_custom_call.1} parent=1 // pred_check
      %p47 = pneg %p46
    $region19: #{tpu_custom_call.1} parent=1 // pred_check_branch
      %49 = sbr.rel (%p47) target = $region21
    $region20: #{tpu_custom_call.1} parent=1 // pred_region
      %50 = vst [vmem:[#allocation7] sm:$0xff] 0.0
      %51 = vst [vmem:[#allocation7 + $0x8] sm:$0xff] 0.0
      %vm52 = vcmask 359424
      %53 = vst.msk [vmem:[#allocation7 + $0x10] sm:$0xff] %vm52, 0.0
    $region21: #{tpu_custom_call.1} parent=1 // pred_fallthru
      _
    %v54 = vld [vmem:[#allocation2] sm:$0xff]
    %v55 = vld [vmem:[#allocation2 + $0x8] sm:$0xff]
    %v56 = vld [vmem:[#allocation2 + $0x10] sm:$0xff]
    %v57 = vld [vmem:[#allocation5] sm:$0xff]
    %v58 = vld [vmem:[#allocation5 + $0x8] sm:$0xff]
    %v59 = vld [vmem:[#allocation5 + $0x10] sm:$0xff]
    %v60 = vmax.f32 %v54, 0.0
    %v61 = vmax.f32 %v55, 0.0
    %v62 = vmax.f32 %v56, 0.0
    %v63 = vmul.f32 %v54, %v57
    %v64 = vmul.f32 %v55, %v58
    %v65 = vmul.f32 %v56, %v59
    %v66 = vsub.f32 %v60, %v63
    %v67 = vsub.f32 %v61, %v64
    %v68 = vsub.f32 %v62, %v65
    %v69 = vand.u32 2147483647, %v54
    %v70 = vand.u32 2147483647, %v55
    %v71 = vand.u32 2147483647, %v56
    %v72 = vsub.f32 0.0, %v69
    %v73 = vsub.f32 0.0, %v70
    %v74 = vsub.f32 0.0, %v71
    %v75 = vmul.f32 %v72, 1.442695
    %v76 = vpow.pop %v75
    %v77 = vmul.f32 %v73, 1.442695
    %v78 = vpow.pop %v77
    %v79 = vmul.f32 %v74, 1.442695
    %v80 = vpow.pop %v79
    %v81 = vadd.f32 %v76, 1.0
    %v82 = vlog2.pop %v81
    %v83 = vmul.f32 %v82, 0.6931472
    %v84 = vmul.f32 -0.5, %v76
    %v85 = vadd.f32 %v84, 1.0
    %v86 = vmul.f32 %v85, %v76
    %v87 = vand.u32 2147483647, %v76
    %vm88 = vcmp.lt.f32.partialorder %v87, 0.0004427343
    %v89 = vsel %vm88, %v86, %v83
    %v90 = vadd.f32 %v78, 1.0
    %v91 = vlog2.pop %v90
    %v92 = vmul.f32 %v91, 0.6931472
    %v93 = vmul.f32 -0.5, %v78
    %v94 = vadd.f32 %v93, 1.0
    %v95 = vmul.f32 %v94, %v78
    %v96 = vand.u32 2147483647, %v78
    %vm97 = vcmp.lt.f32.partialorder %v96, 0.0004427343
    %v98 = vsel %vm97, %v95, %v92
    %v99 = vadd.f32 %v80, 1.0
    %v100 = vlog2.pop %v99
    %v101 = vmul.f32 %v100, 0.6931472
    %v102 = vmul.f32 -0.5, %v80
    %v103 = vadd.f32 %v102, 1.0
    %v104 = vmul.f32 %v103, %v80
    %v105 = vand.u32 2147483647, %v80
    %vm106 = vcmp.lt.f32.partialorder %v105, 0.0004427343
    %v107 = vsel %vm106, %v104, %v101
    %v108 = vadd.f32 %v66, %v89
    %v109 = vadd.f32 %v67, %v98
    %v110 = vadd.f32 %v68, %v107
    %v111 = vadd.f32 %v108, 0.0
    %v112 = vadd.f32 %v109, 0.0
    %v113 = vadd.f32 %v110, 0.0
    %v114 = vld [vmem:[#allocation7] sm:$0xff]
    %v115 = vld [vmem:[#allocation7 + $0x8] sm:$0xff]
    %v116 = vld [vmem:[#allocation7 + $0x10] sm:$0xff]
    %v117 = vadd.f32 %v114, %v111
    %v118 = vadd.f32 %v115, %v112
    %v119 = vadd.f32 %v116, %v113
    %120 = vst [vmem:[#allocation7] sm:$0xff] %v117
    %121 = vst [vmem:[#allocation7 + $0x8] sm:$0xff] %v118
    %vm122 = vcmask 359424
    %123 = vst.msk [vmem:[#allocation7 + $0x10] sm:$0xff] %vm122, %v119
    // Predicated region
    $region22: #{tpu_custom_call.1} parent=1 // pred_check
      _
    $region23: #{tpu_custom_call.1} parent=1 // pred_check_branch
      %125 = sbr.rel (0) target = $region25
    $region24: #{tpu_custom_call.1} parent=1 // pred_region
      %s127 = ssub.s32 384, 384
      %128 = vsyncadd [#allocation4], %s127
      %s130 = sshll.u32 [#allocation7], 4
      %s131 = int_to_ptr.vmem [resolvable:$true] %s130
      %133 = dma.vmem_to_hbm [thread:$0]  %s131, 384, %s2, [#allocation4]
    $region25: #{tpu_custom_call.1} parent=1 // pred_fallthru
      _
    // Predicated region
    $region26: #{tpu_custom_call.1} parent=1 // pred_check
      _
    $region27: #{tpu_custom_call.1} parent=1 // pred_check_branch
      %135 = sbr.rel (0) target = $region29
    $region28: #{tpu_custom_call.1} parent=1 // pred_region
      %136 = dma.done [#allocation4], 384
    $region29: #{tpu_custom_call.1} parent=1 // pred_fallthru
      _
    %137 = vsyncpa [#allocation3], 1
    %138 = vsyncpa [#allocation6], 1
    %139 = vsyncpa [#allocation4], 1

</llo_original>
